<compile_context>
chip_gen: v7x
topology: tpu7x:2x2x1
jax: 0.10.0
libtpu: 0.0.40
codegen_flags: <defaults>
</compile_context>

<pallas_src>
import functools

import jax
import jax.numpy as jnp
import numpy as np
from jax import lax
from jax.experimental import pallas as pl
from jax.experimental.pallas import tpu as pltpu

_BIG = 1.0e30        # >> any realistic score; marks padded / already-taken units
_N_PAD = 128         # lane-dense index output (last dim multiple of 128)


def _round_up(v, m):
    return ((v + m - 1) // m) * m


def _som_bmu_kernel(x_ref, w2_ref, wsq_ref, idx_ref, *, n, n_pad, big):
    """One batch-row block.

    x_ref:   (TB, Dp) f32    input rows (zero padded along B and D)
    w2_ref:  (Dp, Mp) f32    cached -2*(weight - eps), zero padded
    wsq_ref: (1,  Mp) f32    cached ||weight - eps||^2 per unit, padded columns = BIG
    idx_ref: (TB, n_pad) i32 first n columns hold the top-n BMU indices per row

    score[b, m] = -2 x_b . (w_m - eps) + ||w_m - eps||^2
                = ||x_b - w_m + eps||^2 - ||x_b||^2
    The dropped ||x_b||^2 is a per-row constant, so per-row ordering (and thus the BMU
    top-n selection) is identical to the true pairwise distance.
    """
    x = x_ref[...]
    score = jnp.dot(x, w2_ref[...], preferred_element_type=jnp.float32) + wsq_ref[...]

    tb, mp = score.shape
    col_ids = lax.broadcasted_iota(jnp.int32, (tb, mp), 1)
    out_cols = lax.broadcasted_iota(jnp.int32, (tb, n_pad), 1)
    out = jnp.zeros((tb, n_pad), jnp.int32)

    # n is static and tiny (default 1) -> unrolled. Each step: min-reduce, then lowest
    # index among the minima (== stable-sort tie-break), then knock out the winner.
    for i in range(n):
        row_min = jnp.min(score, axis=1, keepdims=True)                      # (TB, 1)
        idx = jnp.min(jnp.where(score <= row_min, col_ids, mp),
                      axis=1, keepdims=True)                                 # (TB, 1) i32
        out = jnp.where(out_cols == i, idx, out)
        if i + 1 < n:
            score = jnp.where(col_ids == idx, big, score)

    idx_ref[...] = out


def _bmu_indices(x, w2_pad, wsq_pad, *, n):
    """x: (B, D) f32 -> (B, n) int32 indices of the n nearest SOM units.

    Plain traceable helper -- callers are expected to jit around it.
    """
    B, D = x.shape
    Dp, Mp = w2_pad.shape

    Bp0 = _round_up(max(B, 8), 8)
    if Bp0 >= 16:
        # Split the batch grid so both v7x TensorCores get a block ("parallel" axis).
        TB = min(256, _round_up((Bp0 + 1) // 2, 8))
    else:
        TB = Bp0
    Bp = _round_up(Bp0, TB)

    # Only pad: B up to the block multiple, D up to the cached sublane multiple (>= D).
    x_pad = jnp.zeros((Bp, Dp), jnp.float32).at[:B, :D].set(x.astype(jnp.float32))

    # VMEM budget: double-buffered blocks + score intermediates, with headroom; clamp so
    # it stays well inside v7x's 64 MiB physical VMEM (v5e/v6e have 128 MiB).
    vmem_bytes = 4 * (2 * TB * Dp + 2 * Dp * Mp + 2 * 8 * Mp + 2 * TB * _N_PAD
                      + 6 * TB * Mp)
    vmem_limit = int(min(max(vmem_bytes + (2 << 20), 16 << 20), 40 << 20))

    idx = pl.pallas_call(
        functools.partial(_som_bmu_kernel, n=n, n_pad=_N_PAD, big=_BIG),
        out_shape=jax.ShapeDtypeStruct((Bp, _N_PAD), jnp.int32),
        grid_spec=pltpu.PrefetchScalarGridSpec(
            num_scalar_prefetch=0,
            grid=(Bp // TB,),
            in_specs=[
                pl.BlockSpec((TB, Dp), lambda i: (i, 0)),   # x rows, streamed per block
                pl.BlockSpec((Dp, Mp), lambda i: (0, 0)),   # cached -2*(w-eps), invariant
                pl.BlockSpec((1, Mp), lambda i: (0, 0)),    # cached ||w-eps||^2 row
            ],
            out_specs=pl.BlockSpec((TB, _N_PAD), lambda i: (i, 0)),
        ),
        compiler_params=pltpu.CompilerParams(
            dimension_semantics=("parallel",),              # megacore shard over batch
            vmem_limit_bytes=vmem_limit,
        ),
    )(x_pad, w2_pad, wsq_pad)

    return idx[:B, :n]


@functools.partial(jax.jit, static_argnames=("n", "out_w"))
def _som_forward(x, w2_pad, wsq_pad, *, n, out_w):
    """Fused forward: flatten, BMU kernel, index->grid-location arithmetic, transpose."""
    B = x.shape[0]
    xf = x.reshape(B, -1).astype(jnp.float32)                         # (B, D)
    idx = _bmu_indices(xf, w2_pad, wsq_pad, n=n)                      # (B, n) int32
    # Row-major grid enumeration: unit m -> (m // out_w, m % out_w), as float32.
    loc = jnp.stack([(idx // out_w).astype(jnp.float32),
                     (idx % out_w).astype(jnp.float32)], axis=-1)     # (B, n, 2)
    return jnp.transpose(loc, (1, 0, 2))                              # (n, B, 2)


class SOM:
    """JAX/Pallas port of the forward pass of the PyTorch SOM module."""

    def __init__(self, input_size, output_size=(10, 10), lr=0.3, sigma=None, n=1,
                 code_num=10, key=None):
        self.input_size = input_size
        self.output_size = output_size
        self.n = n
        self.lr = lr
        self.code_num = code_num
        self.sigma = 2 if sigma is None else sigma
        self.eps = 1e-6  # nn.PairwiseDistance default eps
        if key is None:
            key = jax.random.PRNGKey(42)

        num_units = output_size[0] * output_size[1]
        assert 1 <= n <= min(num_units, _N_PAD), "n must be within the SOM unit count"
        # torch.randn(input_size, out_h*out_w) -> deterministic normal init here.
        self.weight = jax.random.normal(key, (input_size, num_units), dtype=jnp.float32)
        # locations: (num_units, 2) float32, row-major grid enumeration (kept for parity
        # with the PyTorch module; the kernel path derives locations arithmetically).
        self.locations = jnp.asarray(
            [(xx, yy) for xx in range(output_size[0]) for yy in range(output_size[1])],
            dtype=jnp.float32,
        )
        self._build_weight_cache()
        # TODO(synk): torch.nn.Unfold/Fold, self_organizing (weight update) and the image
        # save helpers are not ported; only the forward pass is implemented. If the weight
        # is ever updated, call _build_weight_cache() again to refresh the padded cache.

    def _build_weight_cache(self):
        """Cache -2*(w - eps) (padded) and ||w - eps||^2 once; reused every forward call."""
        D = self.input_size
        M = self.output_size[0] * self.output_size[1]
        Dp = max(_round_up(D, 8), 8)              # sublane-align only; no 128 padding of D
        Mp = max(_round_up(M, 128), 128)          # lane-align the unit axis
        w_eps = (self.weight - self.eps).astype(jnp.float32)                  # (D, M)
        w2_pad = jnp.zeros((Dp, Mp), jnp.float32).at[:D, :M].set(-2.0 * w_eps)
        wsq = jnp.sum(w_eps * w_eps, axis=0)                                  # (M,)
        wsq_pad = jnp.full((1, Mp), _BIG, jnp.float32).at[0, :M].set(wsq)
        self._w2_pad = jax.device_put(w2_pad)
        self._wsq_pad = jax.device_put(wsq_pad)

    def forward(self, x):
        bmu_locations = _som_forward(x, self._w2_pad, self._wsq_pad,
                                     n=self.n, out_w=self.output_size[1])
        return bmu_locations, 0                   # (n, B, 2) float32, loss = 0

    __call__ = forward


if __name__ == "__main__":
    key = jax.random.PRNGKey(0)
    k_x, k_w = jax.random.split(key)

    batch = 2
    input_size = 49          # e.g. one 7x7 unfolded patch of a single-channel image
    out_w = 10

    x = jax.random.normal(k_x, (batch, input_size), dtype=jnp.float32)

    # --- Pure-JAX reference of the PyTorch math ------------------------------------------
    def reference(som_obj, xv, n):
        eps = 1e-6
        diff = xv[:, :, None] - som_obj.weight[None, :, :] + eps            # (B, D, M)
        dists = jnp.sqrt(jnp.sum(diff * diff, axis=1))                      # (B, M)
        ref_idx = jnp.argsort(dists, axis=1)[:, :n]                         # (B, n)
        ref_loc = jnp.transpose(som_obj.locations[ref_idx], (1, 0, 2))      # (n, B, 2)
        return dists, ref_loc

    # n = 1 (module default) -------------------------------------------------------------
    som = SOM(input_size=input_size, output_size=(out_w, out_w), n=1, key=k_w)
    bmu_locations, loss = som(x)
    bmu_locations = jax.block_until_ready(bmu_locations)

    dists_ref, ref_loc = reference(som, x, som.n)
    assert bmu_locations.shape == (som.n, batch, 2)
    assert bmu_locations.dtype == jnp.float32
    assert loss == 0
    assert np.array_equal(np.asarray(bmu_locations), np.asarray(ref_loc))
    # Robustness: the distances achieved by the kernel's picks match the sorted distances.
    ker_idx = jnp.transpose(
        bmu_locations[..., 0] * out_w + bmu_locations[..., 1], (1, 0)).astype(jnp.int32)
    d_at_ker = jnp.take_along_axis(dists_ref, ker_idx, axis=1)
    d_sorted = jnp.sort(dists_ref, axis=1)[:, : som.n]
    assert np.allclose(np.asarray(d_at_ker), np.asarray(d_sorted), rtol=1e-4, atol=1e-4)

    # n = 3 (exercises the top-n knockout loop) -------------------------------------------
    som3 = SOM(input_size=input_size, output_size=(out_w, out_w), n=3, key=k_w)
    bmu3, loss3 = som3(x)
    bmu3 = jax.block_until_ready(bmu3)
    dists_ref3, ref_loc3 = reference(som3, x, som3.n)
    assert bmu3.shape == (som3.n, batch, 2)
    assert loss3 == 0
    assert np.array_equal(np.asarray(bmu3), np.asarray(ref_loc3))
    ker_idx3 = jnp.transpose(
        bmu3[..., 0] * out_w + bmu3[..., 1], (1, 0)).astype(jnp.int32)
    d_at_ker3 = jnp.take_along_axis(dists_ref3, ker_idx3, axis=1)
    d_sorted3 = jnp.sort(dists_ref3, axis=1)[:, : som3.n]
    assert np.allclose(np.asarray(d_at_ker3), np.asarray(d_sorted3), rtol=1e-4, atol=1e-4)

    print("KERNEL_OK")
</pallas_src>

<mosaic_0001>
module attributes {stable_mosaic.version = 11 : i64} {
  func.func @_som_bmu_kernel(%arg0: i32, %arg1: memref<8x56xf32, #tpu.memory_space<vmem>>, %arg2: memref<56x128xf32, #tpu.memory_space<vmem>>, %arg3: memref<1x128xf32, #tpu.memory_space<vmem>>, %arg4: memref<8x128xi32, #tpu.memory_space<vmem>>) attributes {dimension_semantics = [#tpu.dimension_semantics<parallel>], iteration_bounds = array<i64: 1>, scalar_prefetch = 0 : i64, scratch_operands = 0 : i64, tpu.core_type = #tpu.core_type<tc>, window_params = [{transform_indices = @transform_0, window_bounds = array<i64: 8, 56>}, {pipeline_mode = #tpu.pipeline_mode<synchronous>, transform_indices = @transform_1, window_bounds = array<i64: 56, 128>}, {pipeline_mode = #tpu.pipeline_mode<synchronous>, transform_indices = @transform_2, window_bounds = array<i64: 1, 128>}, {transform_indices = @transform_3, window_bounds = array<i64: 8, 128>}]} {
    %c0 = arith.constant 0 : index
    %c0_0 = arith.constant 0 : index
    %0 = vector.load %arg1[%c0, %c0_0] : memref<8x56xf32, #tpu.memory_space<vmem>>, vector<8x56xf32>
    %c0_1 = arith.constant 0 : index
    %c0_2 = arith.constant 0 : index
    %1 = vector.load %arg2[%c0_1, %c0_2] : memref<56x128xf32, #tpu.memory_space<vmem>>, vector<56x128xf32>
    %cst = arith.constant dense<0.000000e+00> : vector<8x128xf32>
    %2 = tpu.matmul %0, %1, %cst {dimension_numbers = #tpu.dot_dimension_numbers<[1], [0], [0], [1], [0, 0, 1, 1], [], []>} : vector<8x56xf32>, vector<56x128xf32>, vector<8x128xf32> -> vector<8x128xf32>
    %c0_3 = arith.constant 0 : index
    %c0_4 = arith.constant 0 : index
    %3 = vector.load %arg3[%c0_3, %c0_4] : memref<1x128xf32, #tpu.memory_space<vmem>>, vector<1x128xf32>
    %4 = vector.broadcast %3 : vector<1x128xf32> to vector<8x128xf32>
    %5 = arith.addf %2, %4 : vector<8x128xf32>
    %6 = tpu.iota {dimensions = array<i32: 1>} : vector<8x128xi32>
    %7 = tpu.iota {dimensions = array<i32: 1>} : vector<8x128xi32>
    %c0_i32 = arith.constant 0 : i32
    %8 = vector.broadcast %c0_i32 : i32 to vector<8x128xi32>
    %cst_5 = arith.constant dense<0x7F800000> : vector<8xf32>
    %9 = vector.multi_reduction <minimumf>, %5, %cst_5 [1] : vector<8x128xf32> to vector<8xf32>
    %10 = vector.shape_cast %9 : vector<8xf32> to vector<8x1xf32>
    %11 = vector.broadcast %10 : vector<8x1xf32> to vector<8x128xf32>
    %12 = arith.cmpf ole, %5, %11 : vector<8x128xf32>
    %c128_i32 = arith.constant 128 : i32
    %13 = vector.broadcast %c128_i32 : i32 to vector<8x128xi32>
    %14 = arith.select %12, %6, %13 : vector<8x128xi1>, vector<8x128xi32>
    %cst_6 = arith.constant dense<2147483647> : vector<8xi32>
    %15 = vector.multi_reduction <minsi>, %14, %cst_6 [1] : vector<8x128xi32> to vector<8xi32>
    %16 = vector.shape_cast %15 : vector<8xi32> to vector<8x1xi32>
    %c0_i32_7 = arith.constant 0 : i32
    %17 = vector.broadcast %c0_i32_7 : i32 to vector<8x128xi32>
    %18 = arith.cmpi eq, %7, %17 : vector<8x128xi32>
    %19 = vector.shape_cast %16 : vector<8x1xi32> to vector<8x1xi32>
    %20 = vector.broadcast %19 : vector<8x1xi32> to vector<8x128xi32>
    %21 = arith.select %18, %20, %8 : vector<8x128xi1>, vector<8x128xi32>
    %c0_8 = arith.constant 0 : index
    %c0_9 = arith.constant 0 : index
    %22 = vector.load %arg4[%c0_8, %c0_9] : memref<8x128xi32, #tpu.memory_space<vmem>>, vector<8x128xi32>
    tpu.vector_store %arg4[%c0_8, %c0_9], %21 {strides = array<i32>} : memref<8x128xi32, #tpu.memory_space<vmem>>, vector<8x128xi32>,
    return
  }
  func.func @transform_0(%arg0: i32) -> (i32, i32) {
    %c0_i32 = arith.constant 0 : i32
    %c0_i32_0 = arith.constant 0 : i32
    return %arg0, %c0_i32 : i32, i32
  }
  func.func @transform_1(%arg0: i32) -> (i32, i32) {
    %c0_i32 = arith.constant 0 : i32
    %c0_i32_0 = arith.constant 0 : i32
    %c0_i32_1 = arith.constant 0 : i32
    return %c0_i32, %c0_i32_0 : i32, i32
  }
  func.func @transform_2(%arg0: i32) -> (i32, i32) {
    %c0_i32 = arith.constant 0 : i32
    %c0_i32_0 = arith.constant 0 : i32
    %c0_i32_1 = arith.constant 0 : i32
    return %c0_i32, %c0_i32_0 : i32, i32
  }
  func.func @transform_3(%arg0: i32) -> (i32, i32) {
    %c0_i32 = arith.constant 0 : i32
    %c0_i32_0 = arith.constant 0 : i32
    return %arg0, %c0_i32 : i32, i32
  }
}

</mosaic_0001>

<llo_original>
// kernel: _som_forward.1
$region0: #{_som_forward.1}
  #allocation0 [shape = 'u32[]', space=smem, size = 0x4, offset = 0x4, fixed_abs, tag = 'smem constant byte address 0x4 - core index']
  #allocation1 [shape = 'u32[144,128]{1,0:T(1,128)}', space=vmem, size = 0x12000, scoped, tag = 'internal scratch']
  %s0 = inlined_call_operand.vmem [shape: f32[8,56], index: 0, kind: input, shape index: {}]
  %s1 = inlined_call_operand.hbm [shape: f32[56,128], index: 1, kind: input, shape index: {}]
  %s2 = inlined_call_operand.vmem [shape: f32[1,128], index: 2, kind: input, shape index: {}]
  %s3 = inlined_call_operand.vmem [shape: s32[8,128], index: 3, kind: output, shape index: {}]
  %s4 = sld [smem:[#allocation0]]
  $region26: #{_som_forward.1} parent=0
    _
  %s6 = ssub.s32 1, %s4
  %s7 = scalar_select 0, %s6, %s4
  $region1: #{_som_forward.1} parent=0
    #allocation2 [shape = 'u8[28672]{0}', space=vmem, size = 0x7000, scoped, tag = 'input window, operand 1, single buffered']
    #allocation3 [shape = 's32[1]{0}', space=sflag, size = 0x4, scoped, tag = 'scoped memory for _som_forward.1']
    %8 = vsyncpa [#allocation3], 0
    // Predicated region
    $region2: #{_som_forward.1} parent=1 // pred_check
      _
    $region3: #{_som_forward.1} parent=1 // pred_check_branch
      %10 = sbr.rel (0) target = $region5
    $region4: #{_som_forward.1} parent=1 // pred_region
      _
    $region5: #{_som_forward.1} parent=1 // pred_fallthru
      _
    // Predicated region
    $region6: #{_som_forward.1} parent=1 // pred_check
      _
    $region7: #{_som_forward.1} parent=1 // pred_check_branch
      %12 = sbr.rel (0) target = $region9
    $region8: #{_som_forward.1} parent=1 // pred_region
      %s14 = ssub.s32 896, 896
      %15 = vsyncadd [#allocation3], %s14
      %s16 = sshll.u32 [#allocation2], 4
      %s17 = int_to_ptr.vmem [resolvable:$true] %s16
      %22 = dma.hbm_to_vmem [thread:$0]  %s1, 896, %s17, [#allocation3], 128, 128, 8
    $region9: #{_som_forward.1} parent=1 // pred_fallthru
      _
    // Predicated region
    $region10: #{_som_forward.1} parent=1 // pred_check
      _
    $region11: #{_som_forward.1} parent=1 // pred_check_branch
      %24 = sbr.rel (0) target = $region13
    $region12: #{_som_forward.1} parent=1 // pred_region
      _
    $region13: #{_som_forward.1} parent=1 // pred_fallthru
      _
    // Predicated region
    $region14: #{_som_forward.1} parent=1 // pred_check
      _
    $region15: #{_som_forward.1} parent=1 // pred_check_branch
      %26 = sbr.rel (0) target = $region17
    $region16: #{_som_forward.1} parent=1 // pred_region
      %27 = dma.done [#allocation3], 896
    $region17: #{_som_forward.1} parent=1 // pred_fallthru
      _
    %v28 = vld [vmem:[%s0] sm:$0xff]
    %v29 = vld [vmem:[#allocation2] sm:$0xff]
    %v30 = vld [vmem:[#allocation2 + $0x8] sm:$0xff]
    %v31 = vld [vmem:[#allocation2 + $0x10] sm:$0xff]
    %v32 = vld [vmem:[#allocation2 + $0x18] sm:$0xff]
    %v33 = vld [vmem:[#allocation2 + $0x20] sm:$0xff]
    %v34 = vld [vmem:[#allocation2 + $0x28] sm:$0xff]
    %v35 = vld [vmem:[#allocation2 + $0x30] sm:$0xff]
    %v36 = vld [vmem:[%s2] sm:$0x1]
    %v38 = vlaneseq
    %v39 = vshrl.u32 %v38, 7
    %v40 = vsub.s32 0, %v39
    %v41 = vrot.slane %v36, %v40
    %vm43 = vcmask 457728
    %v45 = vsel %vm43, %v28, 0
    %47 = vmatprep.subr.mxu0 0.0
    %48 = vmatpush1.msra.mxu0 %v29
    %49 = vmatprep.subr.mxu0 0.0
    %50 = vmatpush1.msra.mxu0 %v30
    %51 = vmatprep.subr.mxu0 0.0
    %52 = vmatpush1.msra.mxu0 %v31
    %53 = vmatprep.subr.mxu0 0.0
    %54 = vmatpush1.msra.mxu0 %v32
    %55 = vmatprep.subr.mxu0 0.0
    %56 = vmatpush1.msra.mxu0 %v33
    %57 = vmatprep.subr.mxu0 0.0
    %58 = vmatpush1.msra.mxu0 %v34
    %59 = vmatprep.subr.mxu0 0.0
    %60 = vmatpush1.msra.mxu0 %v35
    %61 = vmatprep.subr.mxu0 0.0
    %62 = vmatpush1.msra.mxu0 0.0
    %63 = vmatprep.subr.mxu0 0.0
    %64 = vmatpush1.msra.mxu0 0.0
    %65 = vmatprep.subr.mxu0 0.0
    %66 = vmatpush1.msra.mxu0 0.0
    %67 = vmatprep.subr.mxu0 0.0
    %68 = vmatpush1.msra.mxu0 0.0
    %69 = vmatprep.subr.mxu0 0.0
    %70 = vmatpush1.msra.mxu0 0.0
    %71 = vmatprep.subr.mxu0 0.0
    %72 = vmatpush1.msra.mxu0 0.0
    %73 = vmatprep.subr.mxu0 0.0
    %74 = vmatpush1.msra.mxu0 0.0
    %75 = vmatprep.subr.mxu0 0.0
    %76 = vmatpush1.msra.mxu0 0.0
    %77 = vmatprep.subr.mxu0 0.0
    %78 = vmatpush1.msra.mxu0 0.0
    %79 = vmatprep.subr.mxu0 0.0
    %80 = vmatpush1.msra.mxu0 0.0
    %81 = vmatprep.subr.mxu0 0.0
    %82 = vmatpush1.msra.mxu0 0.0
    %83 = vmatprep.subr.mxu0 0.0
    %84 = vmatpush1.msra.mxu0 0.0
    %85 = vmatprep.subr.mxu0 0.0
    %86 = vmatpush1.msra.mxu0 0.0
    %87 = vmatprep.subr.mxu0 0.0
    %88 = vmatpush1.msra.mxu0 0.0
    %89 = vmatprep.subr.mxu0 0.0
    %90 = vmatpush1.msra.mxu0 0.0
    %91 = vmatprep.subr.mxu0 0.0
    %92 = vmatpush1.msra.mxu0 0.0
    %93 = vmatprep.subr.mxu0 0.0
    %94 = vmatpush1.msra.mxu0 0.0
    %95 = vmatprep.subr.mxu0 0.0
    %96 = vmatpush1.msra.mxu0 0.0
    %97 = vmatprep.subr.mxu0 0.0
    %98 = vmatpush1.msra.mxu0 0.0
    %99 = vmatprep.subr.mxu0 0.0
    %100 = vmatpush1.msra.mxu0 0.0
    %101 = vmatprep.subr.mxu0 0.0
    %102 = vmatpush1.msra.mxu0 0.0
    %103 = vmatprep.subr.mxu0 0.0
    %104 = vmatpush1.msra.mxu0 0.0
    %105 = vmatprep.subr.mxu0 0.0
    %106 = vmatpush1.msra.mxu0 0.0
    %107 = vmatprep.subr.mxu0 0.0
    %108 = vmatpush1.msra.mxu0 0.0
    %109 = vmatprep.subr.mxu0 0.0
    %110 = vmatpush1.msra.mxu0 0.0
    %111 = vmatprep.mubr.f32.mxu0 0.0
    %112 = vmatmul.mubr.f32.gmra.mrb[0].mxu0 %v45
    %v113 = vpop.f32.mrb[0].mxu0
    %v114 = vadd.f32 %v41, %v113
    %v115 = vpop.f32.mrb[0].mxu0
    %116 = vdwg.mxu0
    %v117 = vlaneseq
    %v118 = vand.u32 %v117, 127
    %119 = vmin.xlane.f32.xlu0 %v114
    %v120 = vpop.xlane.xlu0 %119
    %vm121 = vcmp.le.f32.partialorder %v114, %v120
    %v122 = vsel %vm121, %v118, 128
    %v123 = vand.u32 %v122, 65535
    %v124 = vshra.s32 %v122, 16
    %v125 = vcvt.s32.f32 %v123
    %v126 = vcvt.s32.f32 %v124
    %127 = vmin.xlane.f32.xlu0 %v126
    %v128 = vpop.xlane.xlu0 %127
    %vm129 = vcmp.eq.f32.partialorder %v126, %v128
    %v130 = vsel %vm129, %v125, inf
    %131 = vmin.xlane.f32.xlu0 %v130
    %v132 = vpop.xlane.xlu0 %131
    %v133 = vcvt.f32.s32 %v132
    %v134 = vcvt.f32.s32 %v128
    %v135 = vshll.u32 %v134, 16
    %v136 = vadd.s32 %v135, %v133
    %vm137 = vcmp.eq.s32.totalorder %v118, 0
    %v138 = vsel %vm137, %v136, 0
    %139 = vst [vmem:[%s3] sm:$0xff] %v138
    // Predicated region
    $region18: #{_som_forward.1} parent=1 // pred_check
      _
    $region19: #{_som_forward.1} parent=1 // pred_check_branch
      %141 = sbr.rel (0) target = $region21
    $region20: #{_som_forward.1} parent=1 // pred_region
      _
    $region21: #{_som_forward.1} parent=1 // pred_fallthru
      _
    // Predicated region
    $region22: #{_som_forward.1} parent=1 // pred_check
      _
    $region23: #{_som_forward.1} parent=1 // pred_check_branch
      %143 = sbr.rel (0) target = $region25
    $region24: #{_som_forward.1} parent=1 // pred_region
      _
    $region25: #{_som_forward.1} parent=1 // pred_fallthru
      _
    %144 = vsyncpa [#allocation3], 1

</llo_original>
